<compile_context>
chip_gen: v6e
topology: v6e:2x2x1
jax: 0.10.0
libtpu: 0.0.40
codegen_flags: <defaults>
</compile_context>

<pallas_src>
import math
import jax
import jax.numpy as jnp
from jax.experimental import pallas as pl
from jax.experimental.pallas import tpu as pltpu

# ----------------------------- config ---------------------------------------
P = 8                    # IMG_PATCHES
E = 32                   # IMG_PATCH_EMB
H = 4                    # img_transformer_heads
D = E // H               # head dim
LN_EPS = 1e-5
# NOTE: the PyTorch module scales scores by 1/sqrt(IMG_PATCHES), not the
# conventional 1/sqrt(head_dim); we follow the module spec exactly (folded
# into W_q / b_q at parameter-prep time).
SCORE_SCALE = 1.0 / (P ** 0.5)

# Rows (= images * P) per grid step when the batch is large. 128 fills the
# v5e MXU M dim; can be raised to 256 on v6e/v7x.
MAX_ROWS_PER_STEP = 128

assert D == P, "block-diagonal head packing below assumes head_dim == n_patches"


# ----------------------------- kernel ---------------------------------------
def mhsa_kernel(x_ref, wqkv_ref, bqkv_ref, gamma_ref, beta_ref, mask_ref, o_ref):
    x = x_ref[...].astype(jnp.float32)            # (rows, E), residual copy
    rows = x.shape[0]
    nimg = rows // P

    # ---- LayerNorm over last dim (biased variance, matches nn.LayerNorm);
    #      element-wise math kept in f32 (no bf16 VPU on v5e). ----
    mu = jnp.mean(x, axis=-1, keepdims=True)
    xc = x - mu
    var = jnp.mean(xc * xc, axis=-1, keepdims=True)
    xn = xc * jax.lax.rsqrt(var + LN_EPS)
    xn = xn * gamma_ref[...] + beta_ref[...]      # (rows, E) f32

    # ---- fused QKV projection: ONE (rows,E)x(E,3E) bf16 MXU matmul,
    #      f32 accumulation + f32 bias. 1/sqrt(P) already folded into W_q/b_q.
    qkv = jnp.dot(xn.astype(jnp.bfloat16), wqkv_ref[...],
                  preferred_element_type=jnp.float32) + bqkv_ref[...]
    q = qkv[:, 0:E]                               # f32 (pre-scaled)
    k = qkv[:, E:2 * E]
    v = qkv[:, 2 * E:3 * E]

    # Block-diagonal head mask: mask[h*P + p, h'*D + d] = 1 iff h == h'.
    mask_f = mask_ref[...]                        # (H*P, E) f32, 0/1

    for b in range(nimg):                         # static unroll over images
        r0 = b * P
        q_b = q[r0:r0 + P, :]                     # (P, E) f32
        k_b = k[r0:r0 + P, :].astype(jnp.bfloat16)
        v_b = v[r0:r0 + P, :].astype(jnp.bfloat16)
        x_b = x[r0:r0 + P, :]

        # Stack the H heads of Q along the sublane axis and zero off-head
        # columns -> all-head scores in ONE MXU push. The K transpose is
        # folded into dot_general (contract last dims of both operands).
        q_bd = (jnp.broadcast_to(q_b[None], (H, P, E)).reshape(H * P, E)
                * mask_f).astype(jnp.bfloat16)    # (H*P, E)
        s = jax.lax.dot_general(
            q_bd, k_b, (((1,), (1,)), ((), ())),
            preferred_element_type=jnp.float32)   # (H*P, P); row h*P+p = head h

        # ---- softmax over the P key positions (f32) ----
        m = jnp.max(s, axis=-1, keepdims=True)
        e = jnp.exp(s - m)
        l = jnp.sum(e, axis=-1, keepdims=True)
        attn = e * pl.reciprocal(l, approx=True)  # EUP vrcp, effectively free

        # All heads' attn @ V in ONE MXU push; the wanted per-head outputs are
        # the diagonal blocks -> mask then fold the H sublane blocks together.
        o_full = jnp.dot(attn.astype(jnp.bfloat16), v_b,
                         preferred_element_type=jnp.float32)   # (H*P, E)
        o_masked = o_full * mask_f
        o_b = o_masked[0:P, :]
        for h in range(1, H):
            o_b = o_b + o_masked[h * P:(h + 1) * P, :]         # (P, E)

        # Residual uses the pre-norm x; direct contiguous row-slab store.
        o_ref[r0:r0 + P, :] = (x_b + o_b).astype(o_ref.dtype)


# ----------------------------- parameter prep (hoisted, call once) ----------
def prepare_params(wq, bq, wk, bk, wv, bv, gamma, beta):
    """Build fused / pre-transposed kernel parameters once, outside the
    per-call path.  Weights use PyTorch nn.Linear layout: y = x @ W.T + b."""
    wqkv = jnp.concatenate([wq.T * SCORE_SCALE, wk.T, wv.T], axis=1)  # (E, 3E)
    wqkv = wqkv.astype(jnp.bfloat16)
    bqkv = jnp.concatenate([bq * SCORE_SCALE, bk, bv]).reshape(1, 3 * E)
    bqkv = bqkv.astype(jnp.float32)
    g2 = gamma.reshape(1, E).astype(jnp.float32)
    be2 = beta.reshape(1, E).astype(jnp.float32)
    rows_h = jnp.arange(H * P)[:, None] // P
    cols_h = jnp.arange(E)[None, :] // D
    mask = (rows_h == cols_h).astype(jnp.float32)                    # (H*P, E)
    return wqkv, bqkv, g2, be2, mask


# ----------------------------- wrapper ---------------------------------------
def img_mhsa(x, params):
    """x: (B, P, E) float32; params from prepare_params()."""
    wqkv, bqkv, g2, be2, mask = params
    Bsz, Pp, Ee = x.shape
    assert Pp == P and Ee == E
    rows = Bsz * P
    x2d = x.reshape(rows, E)
    out_shape = jax.ShapeDtypeStruct((rows, E), x.dtype)

    if rows <= MAX_ROWS_PER_STEP:
        # Whole batch in a single invocation: no grid, no pipeline scaffolding,
        # every operand resident in VMEM as a full block.
        vmem = pl.BlockSpec(memory_space=pltpu.MemorySpace.VMEM)
        out2d = pl.pallas_call(
            mhsa_kernel,
            out_shape=out_shape,
            in_specs=[vmem] * 6,
            out_specs=vmem,
        )(x2d, wqkv, bqkv, g2, be2, mask)
    else:
        # Large batches: tile images into MAX_ROWS_PER_STEP-row chunks on a
        # "parallel" grid axis (fills the MXU M dim; v7x splits chunks across
        # its two TensorCores).  Per-step VMEM footprint (2x-buffered x/out
        # tiles + ~12 KiB of weights) is tiny on every generation.
        imgs_per_step = MAX_ROWS_PER_STEP // P
        # TODO(synk): pad the batch when it does not divide imgs_per_step.
        assert Bsz % imgs_per_step == 0
        rows_per_step = imgs_per_step * P
        nchunks = Bsz // imgs_per_step
        out2d = pl.pallas_call(
            mhsa_kernel,
            out_shape=out_shape,
            grid=(nchunks,),
            in_specs=[
                pl.BlockSpec((rows_per_step, E), lambda i: (i, 0)),   # x chunk
                pl.BlockSpec((E, 3 * E), lambda i: (0, 0)),           # W_qkv^T
                pl.BlockSpec((1, 3 * E), lambda i: (0, 0)),           # b_qkv
                pl.BlockSpec((1, E), lambda i: (0, 0)),               # gamma
                pl.BlockSpec((1, E), lambda i: (0, 0)),               # beta
                pl.BlockSpec((H * P, E), lambda i: (0, 0)),           # head mask
            ],
            out_specs=pl.BlockSpec((rows_per_step, E), lambda i: (i, 0)),
            compiler_params=pltpu.CompilerParams(
                dimension_semantics=("parallel",)),
        )(x2d, wqkv, bqkv, g2, be2, mask)
    return out2d.reshape(Bsz, P, E)


# ----------------------------- reference (pure JAX, f32) ---------------------
def img_mhsa_ref(x, wq, bq, wk, bk, wv, bv, gamma, beta):
    Bsz, Pp, Ee = x.shape
    mu = jnp.mean(x, axis=-1, keepdims=True)
    var = jnp.mean((x - mu) ** 2, axis=-1, keepdims=True)
    xn = (x - mu) / jnp.sqrt(var + LN_EPS) * gamma + beta
    q = xn @ wq.T + bq
    k = xn @ wk.T + bk
    v = xn @ wv.T + bv
    qh = q.reshape(Bsz, Pp, H, D).transpose(0, 2, 1, 3)          # B,H,P,D
    kh = k.reshape(Bsz, Pp, H, D).transpose(0, 2, 3, 1)          # B,H,D,P
    vh = v.reshape(Bsz, Pp, H, D).transpose(0, 2, 1, 3)          # B,H,P,D
    att = jax.nn.softmax((qh @ kh) / (Pp ** 0.5), axis=-1)
    o = (att @ vh).transpose(0, 2, 1, 3).reshape(Bsz, Pp, Ee)
    return x + o


# ----------------------------- main ------------------------------------------
if __name__ == "__main__":
    key = jax.random.PRNGKey(0)
    ks = jax.random.split(key, 9)
    scale = 1.0 / math.sqrt(E)

    Bsz = 2
    x = jax.random.normal(ks[0], (Bsz, P, E), jnp.float32)
    wq = jax.random.uniform(ks[1], (E, E), jnp.float32, -scale, scale)
    bq = jax.random.uniform(ks[2], (E,), jnp.float32, -scale, scale)
    wk = jax.random.uniform(ks[3], (E, E), jnp.float32, -scale, scale)
    bk = jax.random.uniform(ks[4], (E,), jnp.float32, -scale, scale)
    wv = jax.random.uniform(ks[5], (E, E), jnp.float32, -scale, scale)
    bv = jax.random.uniform(ks[6], (E,), jnp.float32, -scale, scale)
    gamma = jnp.ones((E,), jnp.float32)   # nn.LayerNorm default init
    beta = jnp.zeros((E,), jnp.float32)

    params = prepare_params(wq, bq, wk, bk, wv, bv, gamma, beta)  # hoisted

    # bf16 MXU operands -> compare against the f32 reference with a
    # bf16-level tolerance (per perf review).
    TOL = 3e-2

    # Module-sized case: single-invocation, no-grid VMEM path.
    out = jax.block_until_ready(img_mhsa(x, params))
    ref = img_mhsa_ref(x, wq, bq, wk, bk, wv, bv, gamma, beta)
    assert out.shape == (Bsz, P, E)
    assert jnp.allclose(out, ref, atol=TOL, rtol=TOL), "small-batch mismatch"

    # Larger batch: exercises the gridded, MXU-filling "parallel" path.
    Bbig = 32
    xb = jax.random.normal(ks[7], (Bbig, P, E), jnp.float32)
    outb = jax.block_until_ready(img_mhsa(xb, params))
    refb = img_mhsa_ref(xb, wq, bq, wk, bk, wv, bv, gamma, beta)
    assert jnp.allclose(outb, refb, atol=TOL, rtol=TOL), "large-batch mismatch"

    print("KERNEL_OK")
</pallas_src>

<mosaic_0001>
module attributes {stable_mosaic.version = 11 : i64} {
  func.func @mhsa_kernel(%arg0: memref<16x32xf32, #tpu.memory_space<vmem>>, %arg1: memref<32x96xbf16, #tpu.memory_space<vmem>>, %arg2: memref<1x96xf32, #tpu.memory_space<vmem>>, %arg3: memref<1x32xf32, #tpu.memory_space<vmem>>, %arg4: memref<1x32xf32, #tpu.memory_space<vmem>>, %arg5: memref<32x32xf32, #tpu.memory_space<vmem>>, %arg6: memref<16x32xf32, #tpu.memory_space<vmem>>) attributes {dimension_semantics = [], scalar_prefetch = 0 : i64, scratch_operands = 0 : i64, tpu.core_type = #tpu.core_type<tc>} {
    %c0 = arith.constant 0 : index
    %c0_0 = arith.constant 0 : index
    %0 = vector.load %arg0[%c0, %c0_0] : memref<16x32xf32, #tpu.memory_space<vmem>>, vector<16x32xf32>
    %cst = arith.constant dense<0.000000e+00> : vector<16xf32>
    %1 = vector.multi_reduction <add>, %0, %cst [1] : vector<16x32xf32> to vector<16xf32>
    %2 = vector.shape_cast %1 : vector<16xf32> to vector<16x1xf32>
    %cst_1 = arith.constant 3.200000e+01 : f32
    %3 = vector.broadcast %cst_1 : f32 to vector<16x1xf32>
    %4 = arith.divf %2, %3 : vector<16x1xf32>
    %5 = vector.broadcast %4 : vector<16x1xf32> to vector<16x32xf32>
    %6 = arith.subf %0, %5 : vector<16x32xf32>
    %7 = arith.mulf %6, %6 : vector<16x32xf32>
    %cst_2 = arith.constant dense<0.000000e+00> : vector<16xf32>
    %8 = vector.multi_reduction <add>, %7, %cst_2 [1] : vector<16x32xf32> to vector<16xf32>
    %9 = vector.shape_cast %8 : vector<16xf32> to vector<16x1xf32>
    %cst_3 = arith.constant 3.200000e+01 : f32
    %10 = vector.broadcast %cst_3 : f32 to vector<16x1xf32>
    %11 = arith.divf %9, %10 : vector<16x1xf32>
    %cst_4 = arith.constant 9.99999974E-6 : f32
    %12 = vector.broadcast %cst_4 : f32 to vector<16x1xf32>
    %13 = arith.addf %11, %12 : vector<16x1xf32>
    %14 = math.rsqrt %13 : vector<16x1xf32>
    %15 = vector.broadcast %14 : vector<16x1xf32> to vector<16x32xf32>
    %16 = arith.mulf %6, %15 : vector<16x32xf32>
    %c0_5 = arith.constant 0 : index
    %c0_6 = arith.constant 0 : index
    %17 = vector.load %arg3[%c0_5, %c0_6] : memref<1x32xf32, #tpu.memory_space<vmem>>, vector<1x32xf32>
    %18 = vector.broadcast %17 : vector<1x32xf32> to vector<16x32xf32>
    %19 = arith.mulf %16, %18 : vector<16x32xf32>
    %c0_7 = arith.constant 0 : index
    %c0_8 = arith.constant 0 : index
    %20 = vector.load %arg4[%c0_7, %c0_8] : memref<1x32xf32, #tpu.memory_space<vmem>>, vector<1x32xf32>
    %21 = vector.broadcast %20 : vector<1x32xf32> to vector<16x32xf32>
    %22 = arith.addf %19, %21 : vector<16x32xf32>
    %23 = arith.truncf %22 : vector<16x32xf32> to vector<16x32xbf16>
    %c0_9 = arith.constant 0 : index
    %c0_10 = arith.constant 0 : index
    %24 = vector.load %arg1[%c0_9, %c0_10] : memref<32x96xbf16, #tpu.memory_space<vmem>>, vector<32x96xbf16>
    %cst_11 = arith.constant dense<0.000000e+00> : vector<16x96xf32>
    %25 = tpu.matmul %23, %24, %cst_11 {dimension_numbers = #tpu.dot_dimension_numbers<[1], [0], [0], [1], [0, 0, 1, 1], [], []>} : vector<16x32xbf16>, vector<32x96xbf16>, vector<16x96xf32> -> vector<16x96xf32>
    %c0_12 = arith.constant 0 : index
    %c0_13 = arith.constant 0 : index
    %26 = vector.load %arg2[%c0_12, %c0_13] : memref<1x96xf32, #tpu.memory_space<vmem>>, vector<1x96xf32>
    %27 = vector.broadcast %26 : vector<1x96xf32> to vector<16x96xf32>
    %28 = arith.addf %25, %27 : vector<16x96xf32>
    %29 = vector.extract_strided_slice %28 {offsets = [0, 0], sizes = [16, 32], strides = [1, 1]} : vector<16x96xf32> to vector<16x32xf32>
    %30 = vector.extract_strided_slice %28 {offsets = [0, 32], sizes = [16, 32], strides = [1, 1]} : vector<16x96xf32> to vector<16x32xf32>
    %31 = vector.extract_strided_slice %28 {offsets = [0, 64], sizes = [16, 32], strides = [1, 1]} : vector<16x96xf32> to vector<16x32xf32>
    %c0_14 = arith.constant 0 : index
    %c0_15 = arith.constant 0 : index
    %32 = vector.load %arg5[%c0_14, %c0_15] : memref<32x32xf32, #tpu.memory_space<vmem>>, vector<32x32xf32>
    %33 = vector.extract_strided_slice %29 {offsets = [0, 0], sizes = [8, 32], strides = [1, 1]} : vector<16x32xf32> to vector<8x32xf32>
    %34 = vector.extract_strided_slice %30 {offsets = [0, 0], sizes = [8, 32], strides = [1, 1]} : vector<16x32xf32> to vector<8x32xf32>
    %35 = arith.truncf %34 : vector<8x32xf32> to vector<8x32xbf16>
    %36 = vector.extract_strided_slice %31 {offsets = [0, 0], sizes = [8, 32], strides = [1, 1]} : vector<16x32xf32> to vector<8x32xf32>
    %37 = arith.truncf %36 : vector<8x32xf32> to vector<8x32xbf16>
    %38 = vector.extract_strided_slice %0 {offsets = [0, 0], sizes = [8, 32], strides = [1, 1]} : vector<16x32xf32> to vector<8x32xf32>
    %39 = vector.shape_cast %33 : vector<8x32xf32> to vector<1x8x32xf32>
    %40 = vector.shape_cast %39 : vector<1x8x32xf32> to vector<1x8x32xf32>
    %41 = vector.broadcast %40 : vector<1x8x32xf32> to vector<4x8x32xf32>
    %42 = vector.shape_cast %41 : vector<4x8x32xf32> to vector<32x32xf32>
    %43 = arith.mulf %42, %32 : vector<32x32xf32>
    %44 = arith.truncf %43 : vector<32x32xf32> to vector<32x32xbf16>
    %cst_16 = arith.constant dense<0.000000e+00> : vector<32x8xf32>
    %45 = tpu.matmul %44, %35, %cst_16 {dimension_numbers = #tpu.dot_dimension_numbers<[1], [1], [0], [0], [0, 0, 1, 0], [], []>} : vector<32x32xbf16>, vector<8x32xbf16>, vector<32x8xf32> -> vector<32x8xf32>
    %cst_17 = arith.constant dense<0xFF800000> : vector<32xf32>
    %46 = vector.multi_reduction <maximumf>, %45, %cst_17 [1] : vector<32x8xf32> to vector<32xf32>
    %47 = vector.shape_cast %46 : vector<32xf32> to vector<32x1xf32>
    %48 = vector.broadcast %47 : vector<32x1xf32> to vector<32x8xf32>
    %49 = arith.subf %45, %48 : vector<32x8xf32>
    %50 = math.exp %49 : vector<32x8xf32>
    %cst_18 = arith.constant dense<0.000000e+00> : vector<32xf32>
    %51 = vector.multi_reduction <add>, %50, %cst_18 [1] : vector<32x8xf32> to vector<32xf32>
    %52 = vector.shape_cast %51 : vector<32xf32> to vector<32x1xf32>
    %53 = tpu.reciprocal %52 {approx = true} : vector<32x1xf32> -> vector<32x1xf32>
    %54 = vector.broadcast %53 : vector<32x1xf32> to vector<32x8xf32>
    %55 = arith.mulf %50, %54 : vector<32x8xf32>
    %56 = arith.truncf %55 : vector<32x8xf32> to vector<32x8xbf16>
    %cst_19 = arith.constant dense<0.000000e+00> : vector<32x32xf32>
    %57 = tpu.matmul %56, %37, %cst_19 {dimension_numbers = #tpu.dot_dimension_numbers<[1], [0], [0], [1], [0, 0, 1, 1], [], []>} : vector<32x8xbf16>, vector<8x32xbf16>, vector<32x32xf32> -> vector<32x32xf32>
    %58 = arith.mulf %57, %32 : vector<32x32xf32>
    %59 = vector.extract_strided_slice %58 {offsets = [0, 0], sizes = [8, 32], strides = [1, 1]} : vector<32x32xf32> to vector<8x32xf32>
    %60 = vector.extract_strided_slice %58 {offsets = [8, 0], sizes = [8, 32], strides = [1, 1]} : vector<32x32xf32> to vector<8x32xf32>
    %61 = arith.addf %59, %60 : vector<8x32xf32>
    %62 = vector.extract_strided_slice %58 {offsets = [16, 0], sizes = [8, 32], strides = [1, 1]} : vector<32x32xf32> to vector<8x32xf32>
    %63 = arith.addf %61, %62 : vector<8x32xf32>
    %64 = vector.extract_strided_slice %58 {offsets = [24, 0], sizes = [8, 32], strides = [1, 1]} : vector<32x32xf32> to vector<8x32xf32>
    %65 = arith.addf %63, %64 : vector<8x32xf32>
    %66 = arith.addf %38, %65 : vector<8x32xf32>
    %c0_20 = arith.constant 0 : index
    %c0_21 = arith.constant 0 : index
    %67 = vector.load %arg6[%c0_20, %c0_21] : memref<16x32xf32, #tpu.memory_space<vmem>>, vector<8x32xf32>
    tpu.vector_store %arg6[%c0_20, %c0_21], %66 {strides = array<i32>} : memref<16x32xf32, #tpu.memory_space<vmem>>, vector<8x32xf32>,
    %68 = vector.extract_strided_slice %29 {offsets = [8, 0], sizes = [8, 32], strides = [1, 1]} : vector<16x32xf32> to vector<8x32xf32>
    %69 = vector.extract_strided_slice %30 {offsets = [8, 0], sizes = [8, 32], strides = [1, 1]} : vector<16x32xf32> to vector<8x32xf32>
    %70 = arith.truncf %69 : vector<8x32xf32> to vector<8x32xbf16>
    %71 = vector.extract_strided_slice %31 {offsets = [8, 0], sizes = [8, 32], strides = [1, 1]} : vector<16x32xf32> to vector<8x32xf32>
    %72 = arith.truncf %71 : vector<8x32xf32> to vector<8x32xbf16>
    %73 = vector.extract_strided_slice %0 {offsets = [8, 0], sizes = [8, 32], strides = [1, 1]} : vector<16x32xf32> to vector<8x32xf32>
    %74 = vector.shape_cast %68 : vector<8x32xf32> to vector<1x8x32xf32>
    %75 = vector.shape_cast %74 : vector<1x8x32xf32> to vector<1x8x32xf32>
    %76 = vector.broadcast %75 : vector<1x8x32xf32> to vector<4x8x32xf32>
    %77 = vector.shape_cast %76 : vector<4x8x32xf32> to vector<32x32xf32>
    %78 = arith.mulf %77, %32 : vector<32x32xf32>
    %79 = arith.truncf %78 : vector<32x32xf32> to vector<32x32xbf16>
    %cst_22 = arith.constant dense<0.000000e+00> : vector<32x8xf32>
    %80 = tpu.matmul %79, %70, %cst_22 {dimension_numbers = #tpu.dot_dimension_numbers<[1], [1], [0], [0], [0, 0, 1, 0], [], []>} : vector<32x32xbf16>, vector<8x32xbf16>, vector<32x8xf32> -> vector<32x8xf32>
    %cst_23 = arith.constant dense<0xFF800000> : vector<32xf32>
    %81 = vector.multi_reduction <maximumf>, %80, %cst_23 [1] : vector<32x8xf32> to vector<32xf32>
    %82 = vector.shape_cast %81 : vector<32xf32> to vector<32x1xf32>
    %83 = vector.broadcast %82 : vector<32x1xf32> to vector<32x8xf32>
    %84 = arith.subf %80, %83 : vector<32x8xf32>
    %85 = math.exp %84 : vector<32x8xf32>
    %cst_24 = arith.constant dense<0.000000e+00> : vector<32xf32>
    %86 = vector.multi_reduction <add>, %85, %cst_24 [1] : vector<32x8xf32> to vector<32xf32>
    %87 = vector.shape_cast %86 : vector<32xf32> to vector<32x1xf32>
    %88 = tpu.reciprocal %87 {approx = true} : vector<32x1xf32> -> vector<32x1xf32>
    %89 = vector.broadcast %88 : vector<32x1xf32> to vector<32x8xf32>
    %90 = arith.mulf %85, %89 : vector<32x8xf32>
    %91 = arith.truncf %90 : vector<32x8xf32> to vector<32x8xbf16>
    %cst_25 = arith.constant dense<0.000000e+00> : vector<32x32xf32>
    %92 = tpu.matmul %91, %72, %cst_25 {dimension_numbers = #tpu.dot_dimension_numbers<[1], [0], [0], [1], [0, 0, 1, 1], [], []>} : vector<32x8xbf16>, vector<8x32xbf16>, vector<32x32xf32> -> vector<32x32xf32>
    %93 = arith.mulf %92, %32 : vector<32x32xf32>
    %94 = vector.extract_strided_slice %93 {offsets = [0, 0], sizes = [8, 32], strides = [1, 1]} : vector<32x32xf32> to vector<8x32xf32>
    %95 = vector.extract_strided_slice %93 {offsets = [8, 0], sizes = [8, 32], strides = [1, 1]} : vector<32x32xf32> to vector<8x32xf32>
    %96 = arith.addf %94, %95 : vector<8x32xf32>
    %97 = vector.extract_strided_slice %93 {offsets = [16, 0], sizes = [8, 32], strides = [1, 1]} : vector<32x32xf32> to vector<8x32xf32>
    %98 = arith.addf %96, %97 : vector<8x32xf32>
    %99 = vector.extract_strided_slice %93 {offsets = [24, 0], sizes = [8, 32], strides = [1, 1]} : vector<32x32xf32> to vector<8x32xf32>
    %100 = arith.addf %98, %99 : vector<8x32xf32>
    %101 = arith.addf %73, %100 : vector<8x32xf32>
    %c8 = arith.constant 8 : index
    %c0_26 = arith.constant 0 : index
    %102 = vector.load %arg6[%c8, %c0_26] : memref<16x32xf32, #tpu.memory_space<vmem>>, vector<8x32xf32>
    tpu.vector_store %arg6[%c8, %c0_26], %101 {strides = array<i32>} : memref<16x32xf32, #tpu.memory_space<vmem>>, vector<8x32xf32>,
    return
  }
}

</mosaic_0001>

<llo_original>
// kernel: tpu_custom_call.1
$region0: #{tpu_custom_call.1}
  #allocation0 [shape = 'u32[]', space=smem, size = 0x4, offset = 0x4, fixed_abs, tag = 'smem constant byte address 0x4 - core index']
  #allocation1 [shape = 'u32[144,128]{1,0:T(1,128)}', space=vmem, size = 0x12000, scoped, tag = 'internal scratch']
  %s0 = inlined_call_operand.hbm [shape: f32[16,32], index: 0, kind: input, shape index: {}]
  %s1 = inlined_call_operand.hbm [shape: bf16[32,96], index: 1, kind: input, shape index: {}]
  %s2 = inlined_call_operand.vmem [shape: f32[1,96], index: 2, kind: input, shape index: {}]
  %s3 = inlined_call_operand.vmem [shape: f32[1,32], index: 3, kind: input, shape index: {}]
  %s4 = inlined_call_operand.vmem [shape: f32[1,32], index: 4, kind: input, shape index: {}]
  %s5 = inlined_call_operand.hbm [shape: f32[32,32], index: 5, kind: input, shape index: {}]
  %s6 = inlined_call_operand.hbm [shape: f32[16,32], index: 6, kind: output, shape index: {}]
  %s7 = sld [smem:[#allocation0]]
  $region46: #{tpu_custom_call.1} parent=0
    _
  %s9 = ssub.s32 1, %s7
  %s10 = scalar_select 0, %s9, %s7
  $region1: #{tpu_custom_call.1} parent=0
    #allocation2 [shape = 'u8[8192]{0}', space=vmem, size = 0x2000, scoped, tag = 'input window, operand 0, single buffered']
    #allocation3 [shape = 's32[1]{0}', space=sflag, size = 0x4, scoped, tag = 'scoped memory for tpu_custom_call.1']
    #allocation4 [shape = 's32[1]{0}', space=sflag, size = 0x4, scoped, tag = 'scoped memory for tpu_custom_call.1']
    #allocation5 [shape = 'u8[8192]{0}', space=vmem, size = 0x2000, scoped, tag = 'input window, operand 1, single buffered']
    #allocation6 [shape = 's32[1]{0}', space=sflag, size = 0x4, scoped, tag = 'scoped memory for tpu_custom_call.1']
    #allocation7 [shape = 'u8[16384]{0}', space=vmem, size = 0x4000, scoped, tag = 'input window, operand 5, single buffered']
    #allocation8 [shape = 'u8[8192]{0}', space=vmem, size = 0x2000, scoped, tag = 'output window, operand 0, single buffered']
    %11 = vsyncpa [#allocation3], 0
    %12 = vsyncpa [#allocation6], 0
    %13 = vsyncpa [#allocation4], 0
    // Predicated region
    $region2: #{tpu_custom_call.1} parent=1 // pred_check
      _
    $region3: #{tpu_custom_call.1} parent=1 // pred_check_branch
      %15 = sbr.rel (0) target = $region5
    $region4: #{tpu_custom_call.1} parent=1 // pred_region
      %s17 = ssub.s32 256, 256
      %18 = vsyncadd [#allocation3], %s17
      %s19 = sshll.u32 [#allocation2], 4
      %s20 = int_to_ptr.vmem [resolvable:$true] %s19
      %25 = dma.hbm_to_vmem [thread:$0]  %s0, 256, %s20, [#allocation3], 128, 128, 8
    $region5: #{tpu_custom_call.1} parent=1 // pred_fallthru
      _
    // Predicated region
    $region6: #{tpu_custom_call.1} parent=1 // pred_check
      _
    $region7: #{tpu_custom_call.1} parent=1 // pred_check_branch
      %27 = sbr.rel (0) target = $region9
    $region8: #{tpu_custom_call.1} parent=1 // pred_region
      %s29 = ssub.s32 256, 256
      %30 = vsyncadd [#allocation6], %s29
      %s31 = sshll.u32 [#allocation5], 4
      %s32 = int_to_ptr.vmem [resolvable:$true] %s31
      %37 = dma.hbm_to_vmem [thread:$0]  %s1, 256, %s32, [#allocation6], 64, 64, 4
    $region9: #{tpu_custom_call.1} parent=1 // pred_fallthru
      _
    // Predicated region
    $region10: #{tpu_custom_call.1} parent=1 // pred_check
      _
    $region11: #{tpu_custom_call.1} parent=1 // pred_check_branch
      %39 = sbr.rel (0) target = $region13
    $region12: #{tpu_custom_call.1} parent=1 // pred_region
      _
    $region13: #{tpu_custom_call.1} parent=1 // pred_fallthru
      _
    // Predicated region
    $region14: #{tpu_custom_call.1} parent=1 // pred_check
      _
    $region15: #{tpu_custom_call.1} parent=1 // pred_check_branch
      %41 = sbr.rel (0) target = $region17
    $region16: #{tpu_custom_call.1} parent=1 // pred_region
      _
    $region17: #{tpu_custom_call.1} parent=1 // pred_fallthru
      _
    // Predicated region
    $region18: #{tpu_custom_call.1} parent=1 // pred_check
      _
    $region19: #{tpu_custom_call.1} parent=1 // pred_check_branch
      %43 = sbr.rel (0) target = $region21
    $region20: #{tpu_custom_call.1} parent=1 // pred_region
      _
    $region21: #{tpu_custom_call.1} parent=1 // pred_fallthru
      _
    // Predicated region
    $region22: #{tpu_custom_call.1} parent=1 // pred_check
      _
    $region23: #{tpu_custom_call.1} parent=1 // pred_check_branch
      %45 = sbr.rel (0) target = $region25
    $region24: #{tpu_custom_call.1} parent=1 // pred_region
      %s47 = ssub.s32 512, 512
      %48 = vsyncadd [#allocation6], %s47
      %s49 = sshll.u32 [#allocation7], 4
      %s50 = int_to_ptr.vmem [resolvable:$true] %s49
      %55 = dma.hbm_to_vmem [thread:$0]  %s5, 512, %s50, [#allocation6], 128, 128, 8
    $region25: #{tpu_custom_call.1} parent=1 // pred_fallthru
      _
    // Predicated region
    $region26: #{tpu_custom_call.1} parent=1 // pred_check
      _
    $region27: #{tpu_custom_call.1} parent=1 // pred_check_branch
      %57 = sbr.rel (0) target = $region29
    $region28: #{tpu_custom_call.1} parent=1 // pred_region
      %58 = dma.done [#allocation3], 256
    $region29: #{tpu_custom_call.1} parent=1 // pred_fallthru
      _
    // Predicated region
    $region30: #{tpu_custom_call.1} parent=1 // pred_check
      _
    $region31: #{tpu_custom_call.1} parent=1 // pred_check_branch
      %60 = sbr.rel (0) target = $region33
    $region32: #{tpu_custom_call.1} parent=1 // pred_region
      %61 = dma.done [#allocation6], 256
    $region33: #{tpu_custom_call.1} parent=1 // pred_fallthru
      _
    // Predicated region
    $region34: #{tpu_custom_call.1} parent=1 // pred_check
      _
    $region35: #{tpu_custom_call.1} parent=1 // pred_check_branch
      %63 = sbr.rel (0) target = $region37
    $region36: #{tpu_custom_call.1} parent=1 // pred_region
      %64 = dma.done [#allocation6], 512
    $region37: #{tpu_custom_call.1} parent=1 // pred_fallthru
      _
    %v66 = vld [vmem:[#allocation2] sm:$0xff]
    %v67 = vld [vmem:[#allocation2 + $0x8] sm:$0xff]
    %vm68 = vcmask 261120
    %v69 = vsel %vm68, %v66, 0.0
    %70 = vadd.xlane.f32.xlu0 %v69
    %v71 = vpop.xlane.xlu0 %70
    %v72 = vsel %vm68, %v67, 0.0
    %73 = vadd.xlane.f32.xlu0 %v72
    %v74 = vpop.xlane.xlu0 %73
    %v75 = vrcp.pop 32.0
    %v76 = vmul.f32 %v71, %v75
    %v77 = vmul.f32 %v74, %v75
    %v78 = vsub.f32 %v66, %v76
    %v79 = vsub.f32 %v67, %v77
    %v80 = vmul.f32 %v78, %v78
    %v81 = vmul.f32 %v79, %v79
    %v82 = vsel %vm68, %v80, 0.0
    %83 = vadd.xlane.f32.xlu0 %v82
    %v84 = vpop.xlane.xlu0 %83
    %v85 = vsel %vm68, %v81, 0.0
    %86 = vadd.xlane.f32.xlu0 %v85
    %v87 = vpop.xlane.xlu0 %86
    %v88 = vmul.f32 %v84, %v75
    %v89 = vmul.f32 %v87, %v75
    %v90 = vadd.f32 %v88, 1e-05
    %v91 = vadd.f32 %v89, 1e-05
    %v92 = vrsqrt.pop %v90
    %v93 = vrsqrt.pop %v91
    %v94 = vmul.f32 %v78, %v92
    %v95 = vmul.f32 %v79, %v93
    %v96 = vld [vmem:[%s3] sm:$0x1]
    %v98 = vlaneseq
    %v99 = vshrl.u32 %v98, 7
    %v100 = vsub.s32 0, %v99
    %v101 = vrot.slane %v96, %v100
    %v103 = vmul.f32 %v94, %v101
    %v104 = vmul.f32 %v95, %v101
    %v105 = vld [vmem:[%s4] sm:$0x1]
    %v107 = vlaneseq
    %v108 = vshrl.u32 %v107, 7
    %v109 = vsub.s32 0, %v108
    %v110 = vrot.slane %v105, %v109
    %v112 = vadd.f32 %v103, %v110
    %v113 = vadd.f32 %v104, %v110
    %v114 = vpack.c.bf16 %v113, %v112
    %v115 = vld [vmem:[#allocation5] sm:$0xf]
    %v116 = vld [vmem:[#allocation5 + $0x4] sm:$0xf]
    %v117 = vld [vmem:[#allocation5 + $0x8] sm:$0xf]
    %v118 = vld [vmem:[#allocation5 + $0xc] sm:$0xf]
    %v119 = vld [vmem:[%s2] sm:$0x1]
    %v121 = vlaneseq
    %v122 = vshrl.u32 %v121, 7
    %v123 = vsub.s32 0, %v122
    %v124 = vrot.slane %v119, %v123
    %v130 = vunpack.c.l.b16 %v115
    %v131 = vunpack.c.l.b16 %v116
    %v132 = vunpack.c.l.b16 %v117
    %v133 = vunpack.c.l.b16 %v118
    %v134 = vpack.c.b16 %v131, %v130
    %v135 = vpack.c.b16 %v133, %v132
    %v139 = vsel %vm68, %v114, 0
    %141 = vmatprep.subr.bf16.mxu0 0
    %142 = vmatpush1.bf16.msra.mxu0 0
    %143 = vmatprep.subr.bf16.mxu0 0
    %144 = vmatpush1.bf16.msra.mxu0 0
    %145 = vmatprep.subr.bf16.mxu0 0
    %146 = vmatpush1.bf16.msra.mxu0 0
    %147 = vmatprep.subr.bf16.mxu0 0
    %148 = vmatpush1.bf16.msra.mxu0 0
    %149 = vmatprep.subr.bf16.mxu0 0
    %150 = vmatpush1.bf16.msra.mxu0 0
    %151 = vmatprep.subr.bf16.mxu0 0
    %152 = vmatpush1.bf16.msra.mxu0 0
    %153 = vmatprep.subr.bf16.mxu0 0
    %154 = vmatpush1.bf16.msra.mxu0 %v135
    %155 = vmatprep.subr.bf16.mxu0 0
    %156 = vmatpush1.bf16.msra.mxu0 %v134
    %157 = vmatprep.subr.bf16.mxu0 0
    %158 = vmatpush2.bf16.msra.mxu0 0
    %159 = vmatprep.subr.bf16.mxu0 0
    %160 = vmatpush2.bf16.msra.mxu0 0
    %161 = vmatprep.subr.bf16.mxu0 0
    %162 = vmatpush2.bf16.msra.mxu0 0
    %163 = vmatprep.subr.bf16.mxu0 0
    %164 = vmatpush2.bf16.msra.mxu0 0
    %165 = vmatprep.subr.bf16.mxu0 0
    %166 = vmatpush2.bf16.msra.mxu0 0
    %167 = vmatprep.subr.bf16.mxu0 0
    %168 = vmatpush2.bf16.msra.mxu0 0
    %169 = vmatprep.subr.bf16.mxu0 0
    %170 = vmatpush2.bf16.msra.mxu0 0
    %171 = vmatprep.subr.bf16.mxu0 0
    %172 = vmatpush2.bf16.msra.mxu0 0
    %173 = vmatprep.mubr.bf16.mxu0 0
    %174 = vmatmul.mubr.bf16.gmra.mxu0 %v139
    %v175 = vpop.f32.mrf.mxu0
    %v176 = vadd.f32 %v124, %v175
    %v177 = vpop.f32.mrf.mxu0
    %v178 = vpop.f32.mrf.mxu0
    %v179 = vadd.f32 %v124, %v178
    %v180 = vpop.f32.mrf.mxu0
    %181 = vdwg.mxu0
    %v182 = vld [vmem:[#allocation7] sm:$0xff]
    %v183 = vld [vmem:[#allocation7 + $0x8] sm:$0xff]
    %v184 = vld [vmem:[#allocation7 + $0x10] sm:$0xff]
    %v185 = vld [vmem:[#allocation7 + $0x18] sm:$0xff]
    %v186 = vpack.c.bf16 %v176, %v176
    %v187 = vmul.f32 %v176, %v182
    %v188 = vmul.f32 %v176, %v183
    %v189 = vmul.f32 %v176, %v184
    %v190 = vmul.f32 %v176, %v185
    %v191 = vpack.c.bf16 %v188, %v187
    %v192 = vpack.c.bf16 %v190, %v189
    %194 = vrot.lane.b32.xlu0 %v186, 96
    %v195 = vpop.permute.xlu0 %194
    %v197 = vsel %vm68, %v191, 0
    %v200 = vsel %vm68, %v192, 0
    %v203 = vsel %vm68, %v195, 0
    %205 = vmatprep.subr.bf16.mxu0 0
    %206 = vmatpush1.bf16.xpose.msra.mxu0 0
    %207 = vmatprep.subr.bf16.mxu0 0
    %208 = vmatpush1.bf16.xpose.msra.mxu0 0
    %209 = vmatprep.subr.bf16.mxu0 0
    %210 = vmatpush1.bf16.xpose.msra.mxu0 0
    %211 = vmatprep.subr.bf16.mxu0 0
    %212 = vmatpush1.bf16.xpose.msra.mxu0 0
    %213 = vmatprep.subr.bf16.mxu0 0
    %214 = vmatpush1.bf16.xpose.msra.mxu0 0
    %215 = vmatprep.subr.bf16.mxu0 0
    %216 = vmatpush1.bf16.xpose.msra.mxu0 0
    %217 = vmatprep.subr.bf16.mxu0 0
    %218 = vmatpush1.bf16.xpose.msra.mxu0 0
    %219 = vmatprep.subr.bf16.mxu0 0
    %220 = vmatpush1.bf16.xpose.msra.mxu0 %v203
    %221 = vmatprep.subr.bf16.mxu0 0
    %222 = vmatpush2.bf16.xpose.msra.mxu0 0
    %223 = vmatprep.subr.bf16.mxu0 0
    %224 = vmatpush2.bf16.xpose.msra.mxu0 0
    %225 = vmatprep.subr.bf16.mxu0 0
    %226 = vmatpush2.bf16.xpose.msra.mxu0 0
    %227 = vmatprep.subr.bf16.mxu0 0
    %228 = vmatpush2.bf16.xpose.msra.mxu0 0
    %229 = vmatprep.subr.bf16.mxu0 0
    %230 = vmatpush2.bf16.xpose.msra.mxu0 0
    %231 = vmatprep.subr.bf16.mxu0 0
    %232 = vmatpush2.bf16.xpose.msra.mxu0 0
    %233 = vmatprep.subr.bf16.mxu0 0
    %234 = vmatpush2.bf16.xpose.msra.mxu0 0
    %235 = vmatprep.subr.bf16.mxu0 0
    %236 = vmatpush2.bf16.xpose.msra.mxu0 0
    %237 = vmatprep.mubr.bf16.mxu0 0
    %238 = vmatmul.mubr.bf16.gmra.mxu0 %v197
    %v239 = vpop.f32.mrf.mxu0
    %v240 = vadd.f32 0.0, %v239
    %v241 = vpop.f32.mrf.mxu0
    %v242 = vpop.f32.mrf.mxu0
    %v243 = vadd.f32 0.0, %v242
    %v244 = vpop.f32.mrf.mxu0
    %245 = vmatprep.mubr.bf16.mxu0 0
    %246 = vmatmul.mubr.bf16.gmra.mxu0 %v200
    %v247 = vpop.f32.mrf.mxu0
    %v248 = vadd.f32 0.0, %v247
    %v249 = vpop.f32.mrf.mxu0
    %v250 = vpop.f32.mrf.mxu0
    %v251 = vadd.f32 0.0, %v250
    %v252 = vpop.f32.mrf.mxu0
    %253 = vdwg.mxu0
    %vm254 = vcmask 64512
    %v255 = vsel %vm254, %v240, -inf
    %256 = vmax.xlane.f32.xlu0 %v255
    %v257 = vpop.xlane.xlu0 %256
    %v258 = vsel %vm254, %v243, -inf
    %259 = vmax.xlane.f32.xlu0 %v258
    %v260 = vpop.xlane.xlu0 %259
    %v261 = vsel %vm254, %v248, -inf
    %262 = vmax.xlane.f32.xlu0 %v261
    %v263 = vpop.xlane.xlu0 %262
    %v264 = vsel %vm254, %v251, -inf
    %265 = vmax.xlane.f32.xlu0 %v264
    %v266 = vpop.xlane.xlu0 %265
    %v267 = vsub.f32 %v240, %v257
    %v268 = vsub.f32 %v243, %v260
    %v269 = vsub.f32 %v248, %v263
    %v270 = vsub.f32 %v251, %v266
    %v271 = vmul.f32 %v267, 1.442695
    %v272 = vpow.pop %v271
    %v273 = vmul.f32 %v268, 1.442695
    %v274 = vpow.pop %v273
    %v275 = vmul.f32 %v269, 1.442695
    %v276 = vpow.pop %v275
    %v277 = vmul.f32 %v270, 1.442695
    %v278 = vpow.pop %v277
    %v279 = vsel %vm254, %v272, 0.0
    %280 = vadd.xlane.f32.xlu0 %v279
    %v281 = vpop.xlane.xlu0 %280
    %v282 = vsel %vm254, %v274, 0.0
    %283 = vadd.xlane.f32.xlu0 %v282
    %v284 = vpop.xlane.xlu0 %283
    %v285 = vsel %vm254, %v276, 0.0
    %286 = vadd.xlane.f32.xlu0 %v285
    %v287 = vpop.xlane.xlu0 %286
    %v288 = vsel %vm254, %v278, 0.0
    %289 = vadd.xlane.f32.xlu0 %v288
    %v290 = vpop.xlane.xlu0 %289
    %v291 = vrcp.pop %v281
    %v292 = vrcp.pop %v284
    %v293 = vrcp.pop %v287
    %v294 = vrcp.pop %v290
    %v295 = vmul.f32 %v272, %v291
    %v296 = vmul.f32 %v274, %v292
    %v297 = vmul.f32 %v276, %v293
    %v298 = vmul.f32 %v278, %v294
    %v299 = vpack.c.bf16 %v296, %v295
    %v300 = vpack.c.bf16 %v298, %v297
    %301 = vrot.lane.b32.xlu0 %v186, 64
    %v302 = vpop.permute.xlu0 %301
    %v304 = vsel %vm254, %v299, 0
    %v307 = vsel %vm254, %v300, 0
    %vm309 = vcmask 1043456
    %v311 = vsel %vm309, %v302, 0
    %313 = vmatprep.subr.bf16.mxu0 0
    %314 = vmatpush1.bf16.msra.mxu0 0
    %315 = vmatprep.subr.bf16.mxu0 0
    %316 = vmatpush1.bf16.msra.mxu0 0
    %317 = vmatprep.subr.bf16.mxu0 0
    %318 = vmatpush1.bf16.msra.mxu0 0
    %319 = vmatprep.subr.bf16.mxu0 0
    %320 = vmatpush1.bf16.msra.mxu0 0
    %321 = vmatprep.subr.bf16.mxu0 0
    %322 = vmatpush1.bf16.msra.mxu0 0
    %323 = vmatprep.subr.bf16.mxu0 0
    %324 = vmatpush1.bf16.msra.mxu0 0
    %325 = vmatprep.subr.bf16.mxu0 0
    %326 = vmatpush1.bf16.msra.mxu0 0
    %327 = vmatprep.subr.bf16.mxu0 0
    %328 = vmatpush1.bf16.msra.mxu0 %v311
    %329 = vmatprep.subr.bf16.mxu0 0
    %330 = vmatpush2.bf16.msra.mxu0 0
    %331 = vmatprep.subr.bf16.mxu0 0
    %332 = vmatpush2.bf16.msra.mxu0 0
    %333 = vmatprep.subr.bf16.mxu0 0
    %334 = vmatpush2.bf16.msra.mxu0 0
    %335 = vmatprep.subr.bf16.mxu0 0
    %336 = vmatpush2.bf16.msra.mxu0 0
    %337 = vmatprep.subr.bf16.mxu0 0
    %338 = vmatpush2.bf16.msra.mxu0 0
    %339 = vmatprep.subr.bf16.mxu0 0
    %340 = vmatpush2.bf16.msra.mxu0 0
    %341 = vmatprep.subr.bf16.mxu0 0
    %342 = vmatpush2.bf16.msra.mxu0 0
    %343 = vmatprep.subr.bf16.mxu0 0
    %344 = vmatpush2.bf16.msra.mxu0 0
    %345 = vmatprep.mubr.bf16.mxu0 0
    %346 = vmatmul.mubr.bf16.gmra.mxu0 %v304
    %v347 = vpop.f32.mrf.mxu0
    %v348 = vadd.f32 0.0, %v347
    %v349 = vpop.f32.mrf.mxu0
    %v350 = vpop.f32.mrf.mxu0
    %v351 = vadd.f32 0.0, %v350
    %v352 = vpop.f32.mrf.mxu0
    %353 = vmatprep.mubr.bf16.mxu0 0
    %354 = vmatmul.mubr.bf16.gmra.mxu0 %v307
    %v355 = vpop.f32.mrf.mxu0
    %v356 = vadd.f32 0.0, %v355
    %v357 = vpop.f32.mrf.mxu0
    %v358 = vpop.f32.mrf.mxu0
    %v359 = vadd.f32 0.0, %v358
    %v360 = vpop.f32.mrf.mxu0
    %361 = vdwg.mxu0
    %v362 = vmul.f32 %v348, %v182
    %v363 = vmul.f32 %v351, %v183
    %v364 = vmul.f32 %v356, %v184
    %v365 = vmul.f32 %v359, %v185
    %v366 = vadd.f32 %v362, %v363
    %v367 = vadd.f32 %v366, %v364
    %v368 = vadd.f32 %v367, %v365
    %v369 = vadd.f32 %v66, %v368
    %370 = vst.msk [vmem:[#allocation8] sm:$0xff] %vm68, %v369
    %v371 = vpack.c.bf16 %v179, %v179
    %v372 = vmul.f32 %v179, %v182
    %v373 = vmul.f32 %v179, %v183
    %v374 = vmul.f32 %v179, %v184
    %v375 = vmul.f32 %v179, %v185
    %v376 = vpack.c.bf16 %v373, %v372
    %v377 = vpack.c.bf16 %v375, %v374
    %379 = vrot.lane.b32.xlu0 %v371, 96
    %v380 = vpop.permute.xlu0 %379
    %v382 = vsel %vm68, %v376, 0
    %v385 = vsel %vm68, %v377, 0
    %v388 = vsel %vm68, %v380, 0
    %390 = vmatprep.subr.bf16.mxu0 0
    %391 = vmatpush1.bf16.xpose.msra.mxu0 0
    %392 = vmatprep.subr.bf16.mxu0 0
    %393 = vmatpush1.bf16.xpose.msra.mxu0 0
    %394 = vmatprep.subr.bf16.mxu0 0
    %395 = vmatpush1.bf16.xpose.msra.mxu0 0
    %396 = vmatprep.subr.bf16.mxu0 0
    %397 = vmatpush1.bf16.xpose.msra.mxu0 0
    %398 = vmatprep.subr.bf16.mxu0 0
    %399 = vmatpush1.bf16.xpose.msra.mxu0 0
    %400 = vmatprep.subr.bf16.mxu0 0
    %401 = vmatpush1.bf16.xpose.msra.mxu0 0
    %402 = vmatprep.subr.bf16.mxu0 0
    %403 = vmatpush1.bf16.xpose.msra.mxu0 0
    %404 = vmatprep.subr.bf16.mxu0 0
    %405 = vmatpush1.bf16.xpose.msra.mxu0 %v388
    %406 = vmatprep.subr.bf16.mxu0 0
    %407 = vmatpush2.bf16.xpose.msra.mxu0 0
    %408 = vmatprep.subr.bf16.mxu0 0
    %409 = vmatpush2.bf16.xpose.msra.mxu0 0
    %410 = vmatprep.subr.bf16.mxu0 0
    %411 = vmatpush2.bf16.xpose.msra.mxu0 0
    %412 = vmatprep.subr.bf16.mxu0 0
    %413 = vmatpush2.bf16.xpose.msra.mxu0 0
    %414 = vmatprep.subr.bf16.mxu0 0
    %415 = vmatpush2.bf16.xpose.msra.mxu0 0
    %416 = vmatprep.subr.bf16.mxu0 0
    %417 = vmatpush2.bf16.xpose.msra.mxu0 0
    %418 = vmatprep.subr.bf16.mxu0 0
    %419 = vmatpush2.bf16.xpose.msra.mxu0 0
    %420 = vmatprep.subr.bf16.mxu0 0
    %421 = vmatpush2.bf16.xpose.msra.mxu0 0
    %422 = vmatprep.mubr.bf16.mxu0 0
    %423 = vmatmul.mubr.bf16.gmra.mxu0 %v382
    %v424 = vpop.f32.mrf.mxu0
    %v425 = vadd.f32 0.0, %v424
    %v426 = vpop.f32.mrf.mxu0
    %v427 = vpop.f32.mrf.mxu0
    %v428 = vadd.f32 0.0, %v427
    %v429 = vpop.f32.mrf.mxu0
    %430 = vmatprep.mubr.bf16.mxu0 0
    %431 = vmatmul.mubr.bf16.gmra.mxu0 %v385
    %v432 = vpop.f32.mrf.mxu0
    %v433 = vadd.f32 0.0, %v432
    %v434 = vpop.f32.mrf.mxu0
    %v435 = vpop.f32.mrf.mxu0
    %v436 = vadd.f32 0.0, %v435
    %v437 = vpop.f32.mrf.mxu0
    %438 = vdwg.mxu0
    %v439 = vsel %vm254, %v425, -inf
    %440 = vmax.xlane.f32.xlu0 %v439
    %v441 = vpop.xlane.xlu0 %440
    %v442 = vsel %vm254, %v428, -inf
    %443 = vmax.xlane.f32.xlu0 %v442
    %v444 = vpop.xlane.xlu0 %443
    %v445 = vsel %vm254, %v433, -inf
    %446 = vmax.xlane.f32.xlu0 %v445
    %v447 = vpop.xlane.xlu0 %446
    %v448 = vsel %vm254, %v436, -inf
    %449 = vmax.xlane.f32.xlu0 %v448
    %v450 = vpop.xlane.xlu0 %449
    %v451 = vsub.f32 %v425, %v441
    %v452 = vsub.f32 %v428, %v444
    %v453 = vsub.f32 %v433, %v447
    %v454 = vsub.f32 %v436, %v450
    %v455 = vmul.f32 %v451, 1.442695
    %v456 = vpow.pop %v455
    %v457 = vmul.f32 %v452, 1.442695
    %v458 = vpow.pop %v457
    %v459 = vmul.f32 %v453, 1.442695
    %v460 = vpow.pop %v459
    %v461 = vmul.f32 %v454, 1.442695
    %v462 = vpow.pop %v461
    %v463 = vsel %vm254, %v456, 0.0
    %464 = vadd.xlane.f32.xlu0 %v463
    %v465 = vpop.xlane.xlu0 %464
    %v466 = vsel %vm254, %v458, 0.0
    %467 = vadd.xlane.f32.xlu0 %v466
    %v468 = vpop.xlane.xlu0 %467
    %v469 = vsel %vm254, %v460, 0.0
    %470 = vadd.xlane.f32.xlu0 %v469
    %v471 = vpop.xlane.xlu0 %470
    %v472 = vsel %vm254, %v462, 0.0
    %473 = vadd.xlane.f32.xlu0 %v472
    %v474 = vpop.xlane.xlu0 %473
    %v475 = vrcp.pop %v465
    %v476 = vrcp.pop %v468
    %v477 = vrcp.pop %v471
    %v478 = vrcp.pop %v474
    %v479 = vmul.f32 %v456, %v475
    %v480 = vmul.f32 %v458, %v476
    %v481 = vmul.f32 %v460, %v477
    %v482 = vmul.f32 %v462, %v478
    %v483 = vpack.c.bf16 %v480, %v479
    %v484 = vpack.c.bf16 %v482, %v481
    %485 = vrot.lane.b32.xlu0 %v371, 64
    %v486 = vpop.permute.xlu0 %485
    %v488 = vsel %vm254, %v483, 0
    %v491 = vsel %vm254, %v484, 0
    %v494 = vsel %vm309, %v486, 0
    %496 = vmatprep.subr.bf16.mxu0 0
    %497 = vmatpush1.bf16.msra.mxu0 0
    %498 = vmatprep.subr.bf16.mxu0 0
    %499 = vmatpush1.bf16.msra.mxu0 0
    %500 = vmatprep.subr.bf16.mxu0 0
    %501 = vmatpush1.bf16.msra.mxu0 0
    %502 = vmatprep.subr.bf16.mxu0 0
    %503 = vmatpush1.bf16.msra.mxu0 0
    %504 = vmatprep.subr.bf16.mxu0 0
    %505 = vmatpush1.bf16.msra.mxu0 0
    %506 = vmatprep.subr.bf16.mxu0 0
    %507 = vmatpush1.bf16.msra.mxu0 0
    %508 = vmatprep.subr.bf16.mxu0 0
    %509 = vmatpush1.bf16.msra.mxu0 0
    %510 = vmatprep.subr.bf16.mxu0 0
    %511 = vmatpush1.bf16.msra.mxu0 %v494
    %512 = vmatprep.subr.bf16.mxu0 0
    %513 = vmatpush2.bf16.msra.mxu0 0
    %514 = vmatprep.subr.bf16.mxu0 0
    %515 = vmatpush2.bf16.msra.mxu0 0
    %516 = vmatprep.subr.bf16.mxu0 0
    %517 = vmatpush2.bf16.msra.mxu0 0
    %518 = vmatprep.subr.bf16.mxu0 0
    %519 = vmatpush2.bf16.msra.mxu0 0
    %520 = vmatprep.subr.bf16.mxu0 0
    %521 = vmatpush2.bf16.msra.mxu0 0
    %522 = vmatprep.subr.bf16.mxu0 0
    %523 = vmatpush2.bf16.msra.mxu0 0
    %524 = vmatprep.subr.bf16.mxu0 0
    %525 = vmatpush2.bf16.msra.mxu0 0
    %526 = vmatprep.subr.bf16.mxu0 0
    %527 = vmatpush2.bf16.msra.mxu0 0
    %528 = vmatprep.mubr.bf16.mxu0 0
    %529 = vmatmul.mubr.bf16.gmra.mxu0 %v488
    %v530 = vpop.f32.mrf.mxu0
    %v531 = vadd.f32 0.0, %v530
    %v532 = vpop.f32.mrf.mxu0
    %v533 = vpop.f32.mrf.mxu0
    %v534 = vadd.f32 0.0, %v533
    %v535 = vpop.f32.mrf.mxu0
    %536 = vmatprep.mubr.bf16.mxu0 0
    %537 = vmatmul.mubr.bf16.gmra.mxu0 %v491
    %v538 = vpop.f32.mrf.mxu0
    %v539 = vadd.f32 0.0, %v538
    %v540 = vpop.f32.mrf.mxu0
    %v541 = vpop.f32.mrf.mxu0
    %v542 = vadd.f32 0.0, %v541
    %v543 = vpop.f32.mrf.mxu0
    %544 = vdwg.mxu0
    %v545 = vmul.f32 %v531, %v182
    %v546 = vmul.f32 %v534, %v183
    %v547 = vmul.f32 %v539, %v184
    %v548 = vmul.f32 %v542, %v185
    %v549 = vadd.f32 %v545, %v546
    %v550 = vadd.f32 %v549, %v547
    %v551 = vadd.f32 %v550, %v548
    %v552 = vadd.f32 %v67, %v551
    %553 = vst.msk [vmem:[#allocation8 + $0x8] sm:$0xff] %vm68, %v552
    // Predicated region
    $region38: #{tpu_custom_call.1} parent=1 // pred_check
      _
    $region39: #{tpu_custom_call.1} parent=1 // pred_check_branch
      %555 = sbr.rel (0) target = $region41
    $region40: #{tpu_custom_call.1} parent=1 // pred_region
      %s557 = ssub.s32 256, 256
      %558 = vsyncadd [#allocation4], %s557
      %s559 = sshll.u32 [#allocation8], 4
      %s560 = int_to_ptr.vmem [resolvable:$true] %s559
      %565 = dma.vmem_to_hbm [thread:$0]  %s560, 256, %s6, [#allocation4], 128, 128, 8
    $region41: #{tpu_custom_call.1} parent=1 // pred_fallthru
      _
    // Predicated region
    $region42: #{tpu_custom_call.1} parent=1 // pred_check
      _
    $region43: #{tpu_custom_call.1} parent=1 // pred_check_branch
      %567 = sbr.rel (0) target = $region45
    $region44: #{tpu_custom_call.1} parent=1 // pred_region
      %568 = dma.done [#allocation4], 256
    $region45: #{tpu_custom_call.1} parent=1 // pred_fallthru
      _
    %569 = vsyncpa [#allocation3], 1
    %570 = vsyncpa [#allocation6], 1
    %571 = vsyncpa [#allocation4], 1

</llo_original>
